<compile_context>
chip_gen: v5e
topology: v5e:2x2
jax: 0.10.0
libtpu: 0.0.40
codegen_flags: <defaults>
</compile_context>

<pallas_src>
import functools

import jax
import jax.numpy as jnp
from jax.experimental import pallas as pl
from jax.experimental import pallas as _pl_unused  # noqa: F401 (keep import style explicit)
from jax.experimental.pallas import tpu as pltpu


def fused_gnn_kernel(adj_ref, x_ref, w_ref, out_ref, *, in_dim, hidden_dim, out_dim):
    """One graph per grid step. adj_ref: (N,N), x_ref: (N,Din), w_ref: packed slab."""
    f32 = jnp.float32
    H = hidden_dim

    adj = adj_ref[...]                      # (N, N)   f32, row-normalized (mean agg)
    h = x_ref[...].astype(f32)              # (N, Din) f32
    w = w_ref[...]                          # (2*Din + 4*H + 3, H) f32

    # Packed-slab layout (all slicing below is along sublane rows -> cheap):
    r_w1 = 0
    r_w2 = r_w1 + 2 * in_dim
    r_w3 = r_w2 + 2 * H
    r_b = r_w3 + 2 * H
    w1s = w[r_w1:r_w1 + in_dim, :]          # (Din, H)
    w1n = w[r_w1 + in_dim:r_w2, :]          # (Din, H)
    w2s = w[r_w2:r_w2 + H, :]               # (H, H)
    w2n = w[r_w2 + H:r_w3, :]               # (H, H)
    w3s = w[r_w3:r_w3 + H, :]               # (H, H)  cols >= out_dim are zero
    w3n = w[r_w3 + H:r_b, :]                # (H, H)  cols >= out_dim are zero
    b1 = w[r_b:r_b + 1, :]                  # (1, H)
    b2 = w[r_b + 1:r_b + 2, :]              # (1, H)
    b3 = w[r_b + 2:r_b + 3, :]              # (1, H)  cols >= out_dim are zero

    # ---- Layer 1: aggregate -> project -> ReLU ----
    agg = jnp.dot(adj, h, preferred_element_type=f32)
    h = (jnp.dot(h, w1s, preferred_element_type=f32)
         + jnp.dot(agg, w1n, preferred_element_type=f32) + b1)
    h = jnp.maximum(h, 0.0)

    # ---- Layer 2: aggregate -> project -> ReLU ----
    agg = jnp.dot(adj, h, preferred_element_type=f32)
    h = (jnp.dot(h, w2s, preferred_element_type=f32)
         + jnp.dot(agg, w2n, preferred_element_type=f32) + b2)
    h = jnp.maximum(h, 0.0)

    # ---- Layer 3: aggregate -> project (no ReLU); padded cols stay exactly 0 ----
    agg = jnp.dot(adj, h, preferred_element_type=f32)
    h = (jnp.dot(h, w3s, preferred_element_type=f32)
         + jnp.dot(agg, w3n, preferred_element_type=f32) + b3)

    out_ref[...] = h[:, :out_dim].astype(out_ref.dtype)


@functools.partial(jax.jit, static_argnames=("in_dim", "hidden_dim", "out_dim"))
def gnn_forward(adj_norm, features, wpacked, *, in_dim, hidden_dim, out_dim):
    """Forward pass. Accepts a single graph (N,N)/(N,Din) or a batch (B,N,N)/(B,N,Din)."""
    single = adj_norm.ndim == 2
    adj = adj_norm[None] if single else adj_norm
    x = features[None] if single else features
    B, N, _ = adj.shape

    kernel = functools.partial(fused_gnn_kernel,
                               in_dim=in_dim, hidden_dim=hidden_dim, out_dim=out_dim)

    # Advisory cost so XLA can overlap this tiny custom call with surrounding ops.
    flops = 2 * B * (N * N * (in_dim + 2 * hidden_dim)
                     + N * (2 * in_dim * hidden_dim + 4 * hidden_dim * hidden_dim))
    bytes_accessed = 4 * (B * N * N + B * N * in_dim + int(wpacked.size) + B * N * out_dim)

    out = pl.pallas_call(
        kernel,
        out_shape=jax.ShapeDtypeStruct((B, N, out_dim), jnp.float32),
        grid=(B,),  # one graph per grid step
        in_specs=[
            pl.BlockSpec((None, N, N), lambda b: (b, 0, 0)),
            pl.BlockSpec((None, N, in_dim), lambda b: (b, 0, 0)),
            pl.BlockSpec(wpacked.shape, lambda b: (0, 0)),   # same block every step
        ],
        out_specs=pl.BlockSpec((None, N, out_dim), lambda b: (b, 0, 0)),
        compiler_params=pltpu.CompilerParams(dimension_semantics=("parallel",)),
        cost_estimate=pl.CostEstimate(flops=flops, transcendentals=0,
                                      bytes_accessed=bytes_accessed),
    )(adj.astype(jnp.float32), x.astype(jnp.float32), wpacked)

    return out[0] if single else out


def pack_gnn_params(params, in_dim, hidden_dim, out_dim):
    """Pack all SAGEConv weights/biases into ONE f32 slab (done once at init).

    Layout (rows x hidden_dim lanes):
      [W1_self; W1_neigh; W2_self; W2_neigh; W3_self(pad); W3_neigh(pad); b1; b2; b3(pad)]
    """
    assert out_dim <= hidden_dim, "packing assumes out_dim <= hidden_dim"
    (w1s, w1n, b1), (w2s, w2n, b2), (w3s, w3n, b3) = params
    H = hidden_dim

    def pad_cols(a):
        return jnp.pad(a, ((0, 0), (0, H - a.shape[1])))

    rows = [
        w1s, w1n,                               # (Din, H) each
        w2s, w2n,                               # (H, H) each
        pad_cols(w3s), pad_cols(w3n),           # (H, H) each, zero-padded cols
        pad_cols(b1.reshape(1, -1)),            # (1, H)
        pad_cols(b2.reshape(1, -1)),            # (1, H)
        pad_cols(b3.reshape(1, -1)),            # (1, H), zero-padded cols
    ]
    return jnp.concatenate(rows, axis=0).astype(jnp.float32)


def gnn_reference(adj_norm, features, params):
    """Pure-JAX f32 reference with the original per-layer semantics."""
    h = features
    n_layers = len(params)
    for idx, (w_s, w_n, b) in enumerate(params):
        agg = adj_norm @ h
        h = h @ w_s + agg @ w_n + b
        if idx < n_layers - 1:
            h = jnp.maximum(h, 0.0)
    return h


def init_params(key, in_dim, hidden_dim, out_dim):
    dims = [(in_dim, hidden_dim), (hidden_dim, hidden_dim), (hidden_dim, out_dim)]
    params = []
    for (d_in, d_out) in dims:
        key, k1, k2, k3 = jax.random.split(key, 4)
        scale = 1.0 / jnp.sqrt(jnp.float32(d_in))
        w_self = jax.random.uniform(k1, (d_in, d_out), jnp.float32, -scale, scale)
        w_neigh = jax.random.uniform(k2, (d_in, d_out), jnp.float32, -scale, scale)
        bias = jax.random.uniform(k3, (d_out,), jnp.float32, -scale, scale)
        params.append((w_self, w_neigh, bias))
    return params


def build_norm_adj(key, batch, num_nodes, edge_prob=0.15):
    # random directed graphs (no self loops); adj[b, dst, src] = 1 if edge src -> dst
    a = (jax.random.uniform(key, (batch, num_nodes, num_nodes)) < edge_prob).astype(jnp.float32)
    a = a * (1.0 - jnp.eye(num_nodes, dtype=jnp.float32))
    deg = jnp.sum(a, axis=-1, keepdims=True)
    # mean aggregation; nodes with zero in-degree aggregate to 0 (DGL behavior)
    return a / jnp.maximum(deg, 1.0)


if __name__ == "__main__":
    num_nodes, in_dim, hidden_dim, out_dim = 64, 16, 32, 8
    batch = 4

    key = jax.random.PRNGKey(0)
    k_feat, k_graph, k_params = jax.random.split(key, 3)

    features = jax.random.normal(k_feat, (batch, num_nodes, in_dim), jnp.float32)
    adj_norm = build_norm_adj(k_graph, batch, num_nodes)
    params = init_params(k_params, in_dim, hidden_dim, out_dim)
    wpacked = pack_gnn_params(params, in_dim, hidden_dim, out_dim)   # packed once at init

    # Single-graph forward (original GNNModel.forward semantics).
    out1 = gnn_forward(adj_norm[0], features[0], wpacked,
                       in_dim=in_dim, hidden_dim=hidden_dim, out_dim=out_dim)
    jax.block_until_ready(out1)
    assert out1.shape == (num_nodes, out_dim)
    ref1 = gnn_reference(adj_norm[0], features[0], params)
    assert jnp.allclose(out1, ref1, atol=3e-2, rtol=3e-2), float(jnp.max(jnp.abs(out1 - ref1)))

    # Batched forward: one graph per grid step ('parallel' axis -> both TCs on v7x).
    outb = gnn_forward(adj_norm, features, wpacked,
                       in_dim=in_dim, hidden_dim=hidden_dim, out_dim=out_dim)
    jax.block_until_ready(outb)
    assert outb.shape == (batch, num_nodes, out_dim)
    refb = jax.vmap(lambda a, x: gnn_reference(a, x, params))(adj_norm, features)
    assert jnp.allclose(outb, refb, atol=3e-2, rtol=3e-2), float(jnp.max(jnp.abs(outb - refb)))

    print("KERNEL_OK")
</pallas_src>

<mosaic_0001>
module attributes {stable_mosaic.version = 11 : i64} {
  func.func @fused_gnn_kernel(%arg0: i32, %arg1: memref<1x64x64xf32, #tpu.memory_space<vmem>>, %arg2: memref<1x64x16xf32, #tpu.memory_space<vmem>>, %arg3: memref<163x32xf32, #tpu.memory_space<vmem>>, %arg4: memref<1x64x8xf32, #tpu.memory_space<vmem>>) attributes {dimension_semantics = [#tpu.dimension_semantics<parallel>], iteration_bounds = array<i64: 1>, scalar_prefetch = 0 : i64, scratch_operands = 0 : i64, tpu.core_type = #tpu.core_type<tc>, window_params = [{transform_indices = @transform_0, window_bounds = array<i64: 1, 64, 64>}, {transform_indices = @transform_1, window_bounds = array<i64: 1, 64, 16>}, {pipeline_mode = #tpu.pipeline_mode<synchronous>, transform_indices = @transform_2, window_bounds = array<i64: 163, 32>}, {transform_indices = @transform_3, window_bounds = array<i64: 1, 64, 8>}]} {
    %c0 = arith.constant 0 : index
    %c0_0 = arith.constant 0 : index
    %c0_1 = arith.constant 0 : index
    %0 = vector.load %arg1[%c0, %c0_0, %c0_1] : memref<1x64x64xf32, #tpu.memory_space<vmem>>, vector<1x64x64xf32>
    %1 = vector.shape_cast %0 : vector<1x64x64xf32> to vector<64x64xf32>
    %c0_2 = arith.constant 0 : index
    %c0_3 = arith.constant 0 : index
    %c0_4 = arith.constant 0 : index
    %2 = vector.load %arg2[%c0_2, %c0_3, %c0_4] : memref<1x64x16xf32, #tpu.memory_space<vmem>>, vector<1x64x16xf32>
    %3 = vector.shape_cast %2 : vector<1x64x16xf32> to vector<64x16xf32>
    %c0_5 = arith.constant 0 : index
    %c0_6 = arith.constant 0 : index
    %4 = vector.load %arg3[%c0_5, %c0_6] : memref<163x32xf32, #tpu.memory_space<vmem>>, vector<163x32xf32>
    %5 = vector.extract_strided_slice %4 {offsets = [0, 0], sizes = [16, 32], strides = [1, 1]} : vector<163x32xf32> to vector<16x32xf32>
    %6 = vector.extract_strided_slice %4 {offsets = [16, 0], sizes = [16, 32], strides = [1, 1]} : vector<163x32xf32> to vector<16x32xf32>
    %7 = vector.extract_strided_slice %4 {offsets = [32, 0], sizes = [32, 32], strides = [1, 1]} : vector<163x32xf32> to vector<32x32xf32>
    %8 = vector.extract_strided_slice %4 {offsets = [64, 0], sizes = [32, 32], strides = [1, 1]} : vector<163x32xf32> to vector<32x32xf32>
    %9 = vector.extract_strided_slice %4 {offsets = [96, 0], sizes = [32, 32], strides = [1, 1]} : vector<163x32xf32> to vector<32x32xf32>
    %10 = vector.extract_strided_slice %4 {offsets = [128, 0], sizes = [32, 32], strides = [1, 1]} : vector<163x32xf32> to vector<32x32xf32>
    %11 = vector.extract_strided_slice %4 {offsets = [160, 0], sizes = [1, 32], strides = [1, 1]} : vector<163x32xf32> to vector<1x32xf32>
    %12 = vector.extract_strided_slice %4 {offsets = [161, 0], sizes = [1, 32], strides = [1, 1]} : vector<163x32xf32> to vector<1x32xf32>
    %13 = vector.extract_strided_slice %4 {offsets = [162, 0], sizes = [1, 32], strides = [1, 1]} : vector<163x32xf32> to vector<1x32xf32>
    %cst = arith.constant dense<0.000000e+00> : vector<64x16xf32>
    %14 = tpu.matmul %1, %3, %cst {dimension_numbers = #tpu.dot_dimension_numbers<[1], [0], [0], [1], [0, 0, 1, 1], [], []>} : vector<64x64xf32>, vector<64x16xf32>, vector<64x16xf32> -> vector<64x16xf32>
    %cst_7 = arith.constant dense<0.000000e+00> : vector<64x32xf32>
    %15 = tpu.matmul %3, %5, %cst_7 {dimension_numbers = #tpu.dot_dimension_numbers<[1], [0], [0], [1], [0, 0, 1, 1], [], []>} : vector<64x16xf32>, vector<16x32xf32>, vector<64x32xf32> -> vector<64x32xf32>
    %cst_8 = arith.constant dense<0.000000e+00> : vector<64x32xf32>
    %16 = tpu.matmul %14, %6, %cst_8 {dimension_numbers = #tpu.dot_dimension_numbers<[1], [0], [0], [1], [0, 0, 1, 1], [], []>} : vector<64x16xf32>, vector<16x32xf32>, vector<64x32xf32> -> vector<64x32xf32>
    %17 = arith.addf %15, %16 : vector<64x32xf32>
    %18 = vector.broadcast %11 : vector<1x32xf32> to vector<64x32xf32>
    %19 = arith.addf %17, %18 : vector<64x32xf32>
    %cst_9 = arith.constant 0.000000e+00 : f32
    %20 = vector.broadcast %cst_9 : f32 to vector<64x32xf32>
    %21 = arith.maximumf %19, %20 : vector<64x32xf32>
    %cst_10 = arith.constant dense<0.000000e+00> : vector<64x32xf32>
    %22 = tpu.matmul %1, %21, %cst_10 {dimension_numbers = #tpu.dot_dimension_numbers<[1], [0], [0], [1], [0, 0, 1, 1], [], []>} : vector<64x64xf32>, vector<64x32xf32>, vector<64x32xf32> -> vector<64x32xf32>
    %cst_11 = arith.constant dense<0.000000e+00> : vector<64x32xf32>
    %23 = tpu.matmul %21, %7, %cst_11 {dimension_numbers = #tpu.dot_dimension_numbers<[1], [0], [0], [1], [0, 0, 1, 1], [], []>} : vector<64x32xf32>, vector<32x32xf32>, vector<64x32xf32> -> vector<64x32xf32>
    %cst_12 = arith.constant dense<0.000000e+00> : vector<64x32xf32>
    %24 = tpu.matmul %22, %8, %cst_12 {dimension_numbers = #tpu.dot_dimension_numbers<[1], [0], [0], [1], [0, 0, 1, 1], [], []>} : vector<64x32xf32>, vector<32x32xf32>, vector<64x32xf32> -> vector<64x32xf32>
    %25 = arith.addf %23, %24 : vector<64x32xf32>
    %26 = vector.broadcast %12 : vector<1x32xf32> to vector<64x32xf32>
    %27 = arith.addf %25, %26 : vector<64x32xf32>
    %cst_13 = arith.constant 0.000000e+00 : f32
    %28 = vector.broadcast %cst_13 : f32 to vector<64x32xf32>
    %29 = arith.maximumf %27, %28 : vector<64x32xf32>
    %cst_14 = arith.constant dense<0.000000e+00> : vector<64x32xf32>
    %30 = tpu.matmul %1, %29, %cst_14 {dimension_numbers = #tpu.dot_dimension_numbers<[1], [0], [0], [1], [0, 0, 1, 1], [], []>} : vector<64x64xf32>, vector<64x32xf32>, vector<64x32xf32> -> vector<64x32xf32>
    %cst_15 = arith.constant dense<0.000000e+00> : vector<64x32xf32>
    %31 = tpu.matmul %29, %9, %cst_15 {dimension_numbers = #tpu.dot_dimension_numbers<[1], [0], [0], [1], [0, 0, 1, 1], [], []>} : vector<64x32xf32>, vector<32x32xf32>, vector<64x32xf32> -> vector<64x32xf32>
    %cst_16 = arith.constant dense<0.000000e+00> : vector<64x32xf32>
    %32 = tpu.matmul %30, %10, %cst_16 {dimension_numbers = #tpu.dot_dimension_numbers<[1], [0], [0], [1], [0, 0, 1, 1], [], []>} : vector<64x32xf32>, vector<32x32xf32>, vector<64x32xf32> -> vector<64x32xf32>
    %33 = arith.addf %31, %32 : vector<64x32xf32>
    %34 = vector.broadcast %13 : vector<1x32xf32> to vector<64x32xf32>
    %35 = arith.addf %33, %34 : vector<64x32xf32>
    %36 = vector.extract_strided_slice %35 {offsets = [0, 0], sizes = [64, 8], strides = [1, 1]} : vector<64x32xf32> to vector<64x8xf32>
    %c0_17 = arith.constant 0 : index
    %c0_18 = arith.constant 0 : index
    %c0_19 = arith.constant 0 : index
    %37 = vector.load %arg4[%c0_17, %c0_18, %c0_19] : memref<1x64x8xf32, #tpu.memory_space<vmem>>, vector<1x64x8xf32>
    %38 = vector.shape_cast %37 : vector<1x64x8xf32> to vector<64x8xf32>
    %39 = vector.shape_cast %36 : vector<64x8xf32> to vector<1x64x8xf32>
    tpu.vector_store %arg4[%c0_17, %c0_18, %c0_19], %39 {strides = array<i32>} : memref<1x64x8xf32, #tpu.memory_space<vmem>>, vector<1x64x8xf32>,
    return
  }
  func.func @transform_0(%arg0: i32) -> (i32, i32, i32) {
    %c0_i32 = arith.constant 0 : i32
    %c0_i32_0 = arith.constant 0 : i32
    %c0_i32_1 = arith.constant 0 : i32
    return %arg0, %c0_i32, %c0_i32_0 : i32, i32, i32
  }
  func.func @transform_1(%arg0: i32) -> (i32, i32, i32) {
    %c0_i32 = arith.constant 0 : i32
    %c0_i32_0 = arith.constant 0 : i32
    %c0_i32_1 = arith.constant 0 : i32
    return %arg0, %c0_i32, %c0_i32_0 : i32, i32, i32
  }
  func.func @transform_2(%arg0: i32) -> (i32, i32) {
    %c0_i32 = arith.constant 0 : i32
    %c0_i32_0 = arith.constant 0 : i32
    %c0_i32_1 = arith.constant 0 : i32
    return %c0_i32, %c0_i32_0 : i32, i32
  }
  func.func @transform_3(%arg0: i32) -> (i32, i32, i32) {
    %c0_i32 = arith.constant 0 : i32
    %c0_i32_0 = arith.constant 0 : i32
    %c0_i32_1 = arith.constant 0 : i32
    return %arg0, %c0_i32, %c0_i32_0 : i32, i32, i32
  }
}

</mosaic_0001>

<llo_original>
// kernel: gnn_forward.1
$region0: #{gnn_forward.1}
  #allocation0 [shape = 'u32[]', space=smem, size = 0x4, offset = 0x4, fixed_abs, tag = 'smem constant byte address 0x4 - core index']
  #allocation1 [shape = 'u32[72,128]{1,0:T(1,128)}', space=vmem, size = 0x9000, scoped, tag = 'internal scratch']
  %s0 = inlined_call_operand.vmem [shape: f32[1,64,64], index: 0, kind: input, shape index: {}]
  %s1 = inlined_call_operand.vmem [shape: f32[1,64,16], index: 1, kind: input, shape index: {}]
  %s2 = inlined_call_operand.vmem [shape: f32[163,32], index: 2, kind: input, shape index: {}]
  %s3 = inlined_call_operand.vmem [shape: f32[1,64,8], index: 3, kind: output, shape index: {}]
  %s4 = sld [smem:[#allocation0]]
  $region22: #{gnn_forward.1} parent=0
    _
  %s6 = ssub.s32 1, %s4
  %s7 = scalar_select 0, %s6, %s4
  // Predicated region
  $region2: #{gnn_forward.1} parent=0 // pred_check
    _
  $region3: #{gnn_forward.1} parent=0 // pred_check_branch
    %9 = sbr.rel (0) target = $region5
  $region4: #{gnn_forward.1} parent=0 // pred_region
    _
  $region5: #{gnn_forward.1} parent=0 // pred_fallthru
    _
  // Predicated region
  $region6: #{gnn_forward.1} parent=0 // pred_check
    _
  $region7: #{gnn_forward.1} parent=0 // pred_check_branch
    %11 = sbr.rel (0) target = $region9
  $region8: #{gnn_forward.1} parent=0 // pred_region
    _
  $region9: #{gnn_forward.1} parent=0 // pred_fallthru
    _
  // Predicated region
  $region10: #{gnn_forward.1} parent=0 // pred_check
    _
  $region11: #{gnn_forward.1} parent=0 // pred_check_branch
    %13 = sbr.rel (0) target = $region13
  $region12: #{gnn_forward.1} parent=0 // pred_region
    _
  $region13: #{gnn_forward.1} parent=0 // pred_fallthru
    _
  %v14 = vld [vmem:[%s0] sm:$0xff]
  %v15 = vld [vmem:[%s0 + $0x8] sm:$0xff]
  %v16 = vld [vmem:[%s0 + $0x10] sm:$0xff]
  %v17 = vld [vmem:[%s0 + $0x18] sm:$0xff]
  %v18 = vld [vmem:[%s0 + $0x20] sm:$0xff]
  %v19 = vld [vmem:[%s0 + $0x28] sm:$0xff]
  %v20 = vld [vmem:[%s0 + $0x30] sm:$0xff]
  %v21 = vld [vmem:[%s0 + $0x38] sm:$0xff]
  %v22 = vld [vmem:[%s1] sm:$0xff]
  %v23 = vld [vmem:[%s1 + $0x8] sm:$0xff]
  %v24 = vld [vmem:[%s1 + $0x10] sm:$0xff]
  %v25 = vld [vmem:[%s1 + $0x18] sm:$0xff]
  %v26 = vld [vmem:[%s1 + $0x20] sm:$0xff]
  %v27 = vld [vmem:[%s1 + $0x28] sm:$0xff]
  %v28 = vld [vmem:[%s1 + $0x30] sm:$0xff]
  %v29 = vld [vmem:[%s1 + $0x38] sm:$0xff]
  %v30 = vld [vmem:[%s2] sm:$0xff]
  %v31 = vld [vmem:[%s2 + $0x8] sm:$0xff]
  %v32 = vld [vmem:[%s2 + $0x10] sm:$0xff]
  %v33 = vld [vmem:[%s2 + $0x18] sm:$0xff]
  %v34 = vld [vmem:[%s2 + $0x20] sm:$0xff]
  %v35 = vld [vmem:[%s2 + $0x28] sm:$0xff]
  %v36 = vld [vmem:[%s2 + $0x30] sm:$0xff]
  %v37 = vld [vmem:[%s2 + $0x38] sm:$0xff]
  %v38 = vld [vmem:[%s2 + $0x40] sm:$0xff]
  %v39 = vld [vmem:[%s2 + $0x48] sm:$0xff]
  %v40 = vld [vmem:[%s2 + $0x50] sm:$0xff]
  %v41 = vld [vmem:[%s2 + $0x58] sm:$0xff]
  %v42 = vld [vmem:[%s2 + $0x60] sm:$0xff]
  %v43 = vld [vmem:[%s2 + $0x68] sm:$0xff]
  %v44 = vld [vmem:[%s2 + $0x70] sm:$0xff]
  %v45 = vld [vmem:[%s2 + $0x78] sm:$0xff]
  %v46 = vld [vmem:[%s2 + $0x80] sm:$0xff]
  %v47 = vld [vmem:[%s2 + $0x88] sm:$0xff]
  %v48 = vld [vmem:[%s2 + $0x90] sm:$0xff]
  %v49 = vld [vmem:[%s2 + $0x98] sm:$0xff]
  %v50 = vld [vmem:[%s2 + $0xa0] sm:$0x7]
  %vm51 = vcmask 523264
  %v53 = vsel %vm51, %v14, 0
  %v56 = vsel %vm51, %v15, 0
  %v59 = vsel %vm51, %v16, 0
  %v62 = vsel %vm51, %v17, 0
  %v65 = vsel %vm51, %v18, 0
  %v68 = vsel %vm51, %v19, 0
  %v71 = vsel %vm51, %v20, 0
  %v74 = vsel %vm51, %v21, 0
  %76 = vmatpush.msra.mxu0 0.0
  %77 = vmatpush.msra.mxu0 0.0
  %78 = vmatpush.msra.mxu0 0.0
  %79 = vmatpush.msra.mxu0 0.0
  %80 = vmatpush.msra.mxu0 0.0
  %81 = vmatpush.msra.mxu0 0.0
  %82 = vmatpush.msra.mxu0 0.0
  %83 = vmatpush.msra.mxu0 0.0
  %84 = vmatpush.msra.mxu0 %v29
  %85 = vmatpush.msra.mxu0 %v28
  %86 = vmatpush.msra.mxu0 %v27
  %87 = vmatpush.msra.mxu0 %v26
  %88 = vmatpush.msra.mxu0 %v25
  %89 = vmatpush.msra.mxu0 %v24
  %90 = vmatpush.msra.mxu0 %v23
  %91 = vmatpush.msra.mxu0 %v22
  %92 = vmatmul.f32.gmra.mxu0 %v53
  %v93 = vpop.f32.mrf.mxu0
  %v94 = vadd.f32 0.0, %v93
  %95 = vmatmul.f32.gmra.mxu0 %v56
  %v96 = vpop.f32.mrf.mxu0
  %v97 = vadd.f32 0.0, %v96
  %98 = vmatmul.f32.gmra.mxu0 %v59
  %v99 = vpop.f32.mrf.mxu0
  %v100 = vadd.f32 0.0, %v99
  %101 = vmatmul.f32.gmra.mxu0 %v62
  %v102 = vpop.f32.mrf.mxu0
  %v103 = vadd.f32 0.0, %v102
  %104 = vmatmul.f32.gmra.mxu0 %v65
  %v105 = vpop.f32.mrf.mxu0
  %v106 = vadd.f32 0.0, %v105
  %107 = vmatmul.f32.gmra.mxu0 %v68
  %v108 = vpop.f32.mrf.mxu0
  %v109 = vadd.f32 0.0, %v108
  %110 = vmatmul.f32.gmra.mxu0 %v71
  %v111 = vpop.f32.mrf.mxu0
  %v112 = vadd.f32 0.0, %v111
  %113 = vmatmul.f32.gmra.mxu0 %v74
  %v114 = vpop.f32.mrf.mxu0
  %v115 = vadd.f32 0.0, %v114
  %116 = vdwg.mxu0
  %vm117 = vcmask 130048
  %v119 = vsel %vm117, %v94, 0
  %v122 = vsel %vm117, %v97, 0
  %v125 = vsel %vm117, %v100, 0
  %v128 = vsel %vm117, %v103, 0
  %v131 = vsel %vm117, %v106, 0
  %v134 = vsel %vm117, %v109, 0
  %v137 = vsel %vm117, %v112, 0
  %v140 = vsel %vm117, %v115, 0
  %142 = vmatpush.msra.mxu0 0.0
  %143 = vmatpush.msra.mxu0 0.0
  %144 = vmatpush.msra.mxu0 0.0
  %145 = vmatpush.msra.mxu0 0.0
  %146 = vmatpush.msra.mxu0 0.0
  %147 = vmatpush.msra.mxu0 0.0
  %148 = vmatpush.msra.mxu0 0.0
  %149 = vmatpush.msra.mxu0 0.0
  %150 = vmatpush.msra.mxu0 0.0
  %151 = vmatpush.msra.mxu0 0.0
  %152 = vmatpush.msra.mxu0 0.0
  %153 = vmatpush.msra.mxu0 0.0
  %154 = vmatpush.msra.mxu0 0.0
  %155 = vmatpush.msra.mxu0 0.0
  %156 = vmatpush.msra.mxu0 %v33
  %157 = vmatpush.msra.mxu0 %v32
  %158 = vmatmul.f32.gmra.mxu0 %v119
  %v159 = vpop.f32.mrf.mxu0
  %v160 = vadd.f32 0.0, %v159
  %161 = vmatmul.f32.gmra.mxu0 %v122
  %v162 = vpop.f32.mrf.mxu0
  %v163 = vadd.f32 0.0, %v162
  %164 = vmatmul.f32.gmra.mxu0 %v125
  %v165 = vpop.f32.mrf.mxu0
  %v166 = vadd.f32 0.0, %v165
  %167 = vmatmul.f32.gmra.mxu0 %v128
  %v168 = vpop.f32.mrf.mxu0
  %v169 = vadd.f32 0.0, %v168
  %170 = vmatmul.f32.gmra.mxu0 %v131
  %v171 = vpop.f32.mrf.mxu0
  %v172 = vadd.f32 0.0, %v171
  %173 = vmatmul.f32.gmra.mxu0 %v134
  %v174 = vpop.f32.mrf.mxu0
  %v175 = vadd.f32 0.0, %v174
  %176 = vmatmul.f32.gmra.mxu0 %v137
  %v177 = vpop.f32.mrf.mxu0
  %v178 = vadd.f32 0.0, %v177
  %179 = vmatmul.f32.gmra.mxu0 %v140
  %v180 = vpop.f32.mrf.mxu0
  %v181 = vadd.f32 0.0, %v180
  %182 = vdwg.mxu0
  %v184 = vsel %vm117, %v22, 0
  %v187 = vsel %vm117, %v23, 0
  %v190 = vsel %vm117, %v24, 0
  %v193 = vsel %vm117, %v25, 0
  %v196 = vsel %vm117, %v26, 0
  %v199 = vsel %vm117, %v27, 0
  %v202 = vsel %vm117, %v28, 0
  %v205 = vsel %vm117, %v29, 0
  %207 = vmatpush.msra.mxu0 0.0
  %208 = vmatpush.msra.mxu0 0.0
  %209 = vmatpush.msra.mxu0 0.0
  %210 = vmatpush.msra.mxu0 0.0
  %211 = vmatpush.msra.mxu0 0.0
  %212 = vmatpush.msra.mxu0 0.0
  %213 = vmatpush.msra.mxu0 0.0
  %214 = vmatpush.msra.mxu0 0.0
  %215 = vmatpush.msra.mxu0 0.0
  %216 = vmatpush.msra.mxu0 0.0
  %217 = vmatpush.msra.mxu0 0.0
  %218 = vmatpush.msra.mxu0 0.0
  %219 = vmatpush.msra.mxu0 0.0
  %220 = vmatpush.msra.mxu0 0.0
  %221 = vmatpush.msra.mxu0 %v31
  %222 = vmatpush.msra.mxu0 %v30
  %223 = vmatmul.f32.gmra.mxu0 %v184
  %v224 = vpop.f32.mrf.mxu0
  %v225 = vadd.f32 %v160, %v224
  %226 = vmatmul.f32.gmra.mxu0 %v187
  %v227 = vpop.f32.mrf.mxu0
  %v228 = vadd.f32 %v163, %v227
  %229 = vmatmul.f32.gmra.mxu0 %v190
  %v230 = vpop.f32.mrf.mxu0
  %v231 = vadd.f32 %v166, %v230
  %232 = vmatmul.f32.gmra.mxu0 %v193
  %v233 = vpop.f32.mrf.mxu0
  %v234 = vadd.f32 %v169, %v233
  %235 = vmatmul.f32.gmra.mxu0 %v196
  %v236 = vpop.f32.mrf.mxu0
  %v237 = vadd.f32 %v172, %v236
  %238 = vmatmul.f32.gmra.mxu0 %v199
  %v239 = vpop.f32.mrf.mxu0
  %v240 = vadd.f32 %v175, %v239
  %241 = vmatmul.f32.gmra.mxu0 %v202
  %v242 = vpop.f32.mrf.mxu0
  %v243 = vadd.f32 %v178, %v242
  %244 = vmatmul.f32.gmra.mxu0 %v205
  %v245 = vpop.f32.mrf.mxu0
  %v246 = vadd.f32 %v181, %v245
  %247 = vdwg.mxu0
  %v248 = vperm.slane %v50, 0
  %v249 = vadd.f32 %v225, %v248
  %v250 = vadd.f32 %v228, %v248
  %v251 = vadd.f32 %v231, %v248
  %v252 = vadd.f32 %v234, %v248
  %v253 = vadd.f32 %v237, %v248
  %v254 = vadd.f32 %v240, %v248
  %v255 = vadd.f32 %v243, %v248
  %v256 = vadd.f32 %v246, %v248
  %v257 = vmax.f32 %v249, 0.0
  %v258 = vmax.f32 %v250, 0.0
  %v259 = vmax.f32 %v251, 0.0
  %v260 = vmax.f32 %v252, 0.0
  %v261 = vmax.f32 %v253, 0.0
  %v262 = vmax.f32 %v254, 0.0
  %v263 = vmax.f32 %v255, 0.0
  %v264 = vmax.f32 %v256, 0.0
  %265 = vmatpush.msra.mxu0 0.0
  %266 = vmatpush.msra.mxu0 0.0
  %267 = vmatpush.msra.mxu0 0.0
  %268 = vmatpush.msra.mxu0 0.0
  %269 = vmatpush.msra.mxu0 0.0
  %270 = vmatpush.msra.mxu0 0.0
  %271 = vmatpush.msra.mxu0 0.0
  %272 = vmatpush.msra.mxu0 0.0
  %273 = vmatpush.msra.mxu0 %v264
  %274 = vmatpush.msra.mxu0 %v263
  %275 = vmatpush.msra.mxu0 %v262
  %276 = vmatpush.msra.mxu0 %v261
  %277 = vmatpush.msra.mxu0 %v260
  %278 = vmatpush.msra.mxu0 %v259
  %279 = vmatpush.msra.mxu0 %v258
  %280 = vmatpush.msra.mxu0 %v257
  %281 = vmatmul.f32.gmra.mxu0 %v53
  %v282 = vpop.f32.mrf.mxu0
  %v283 = vadd.f32 0.0, %v282
  %284 = vmatmul.f32.gmra.mxu0 %v56
  %v285 = vpop.f32.mrf.mxu0
  %v286 = vadd.f32 0.0, %v285
  %287 = vmatmul.f32.gmra.mxu0 %v59
  %v288 = vpop.f32.mrf.mxu0
  %v289 = vadd.f32 0.0, %v288
  %290 = vmatmul.f32.gmra.mxu0 %v62
  %v291 = vpop.f32.mrf.mxu0
  %v292 = vadd.f32 0.0, %v291
  %293 = vmatmul.f32.gmra.mxu0 %v65
  %v294 = vpop.f32.mrf.mxu0
  %v295 = vadd.f32 0.0, %v294
  %296 = vmatmul.f32.gmra.mxu0 %v68
  %v297 = vpop.f32.mrf.mxu0
  %v298 = vadd.f32 0.0, %v297
  %299 = vmatmul.f32.gmra.mxu0 %v71
  %v300 = vpop.f32.mrf.mxu0
  %v301 = vadd.f32 0.0, %v300
  %302 = vmatmul.f32.gmra.mxu0 %v74
  %v303 = vpop.f32.mrf.mxu0
  %v304 = vadd.f32 0.0, %v303
  %305 = vdwg.mxu0
  %vm306 = vcmask 261120
  %v308 = vsel %vm306, %v283, 0
  %v311 = vsel %vm306, %v286, 0
  %v314 = vsel %vm306, %v289, 0
  %v317 = vsel %vm306, %v292, 0
  %v320 = vsel %vm306, %v295, 0
  %v323 = vsel %vm306, %v298, 0
  %v326 = vsel %vm306, %v301, 0
  %v329 = vsel %vm306, %v304, 0
  %331 = vmatpush.msra.mxu0 0.0
  %332 = vmatpush.msra.mxu0 0.0
  %333 = vmatpush.msra.mxu0 0.0
  %334 = vmatpush.msra.mxu0 0.0
  %335 = vmatpush.msra.mxu0 0.0
  %336 = vmatpush.msra.mxu0 0.0
  %337 = vmatpush.msra.mxu0 0.0
  %338 = vmatpush.msra.mxu0 0.0
  %339 = vmatpush.msra.mxu0 0.0
  %340 = vmatpush.msra.mxu0 0.0
  %341 = vmatpush.msra.mxu0 0.0
  %342 = vmatpush.msra.mxu0 0.0
  %343 = vmatpush.msra.mxu0 %v41
  %344 = vmatpush.msra.mxu0 %v40
  %345 = vmatpush.msra.mxu0 %v39
  %346 = vmatpush.msra.mxu0 %v38
  %347 = vmatmul.f32.gmra.mxu0 %v308
  %v348 = vpop.f32.mrf.mxu0
  %v349 = vadd.f32 0.0, %v348
  %350 = vmatmul.f32.gmra.mxu0 %v311
  %v351 = vpop.f32.mrf.mxu0
  %v352 = vadd.f32 0.0, %v351
  %353 = vmatmul.f32.gmra.mxu0 %v314
  %v354 = vpop.f32.mrf.mxu0
  %v355 = vadd.f32 0.0, %v354
  %356 = vmatmul.f32.gmra.mxu0 %v317
  %v357 = vpop.f32.mrf.mxu0
  %v358 = vadd.f32 0.0, %v357
  %359 = vmatmul.f32.gmra.mxu0 %v320
  %v360 = vpop.f32.mrf.mxu0
  %v361 = vadd.f32 0.0, %v360
  %362 = vmatmul.f32.gmra.mxu0 %v323
  %v363 = vpop.f32.mrf.mxu0
  %v364 = vadd.f32 0.0, %v363
  %365 = vmatmul.f32.gmra.mxu0 %v326
  %v366 = vpop.f32.mrf.mxu0
  %v367 = vadd.f32 0.0, %v366
  %368 = vmatmul.f32.gmra.mxu0 %v329
  %v369 = vpop.f32.mrf.mxu0
  %v370 = vadd.f32 0.0, %v369
  %371 = vdwg.mxu0
  %v373 = vsel %vm306, %v257, 0
  %v376 = vsel %vm306, %v258, 0
  %v379 = vsel %vm306, %v259, 0
  %v382 = vsel %vm306, %v260, 0
  %v385 = vsel %vm306, %v261, 0
  %v388 = vsel %vm306, %v262, 0
  %v391 = vsel %vm306, %v263, 0
  %v394 = vsel %vm306, %v264, 0
  %396 = vmatpush.msra.mxu0 0.0
  %397 = vmatpush.msra.mxu0 0.0
  %398 = vmatpush.msra.mxu0 0.0
  %399 = vmatpush.msra.mxu0 0.0
  %400 = vmatpush.msra.mxu0 0.0
  %401 = vmatpush.msra.mxu0 0.0
  %402 = vmatpush.msra.mxu0 0.0
  %403 = vmatpush.msra.mxu0 0.0
  %404 = vmatpush.msra.mxu0 0.0
  %405 = vmatpush.msra.mxu0 0.0
  %406 = vmatpush.msra.mxu0 0.0
  %407 = vmatpush.msra.mxu0 0.0
  %408 = vmatpush.msra.mxu0 %v37
  %409 = vmatpush.msra.mxu0 %v36
  %410 = vmatpush.msra.mxu0 %v35
  %411 = vmatpush.msra.mxu0 %v34
  %412 = vmatmul.f32.gmra.mxu0 %v373
  %v413 = vpop.f32.mrf.mxu0
  %v414 = vadd.f32 %v349, %v413
  %415 = vmatmul.f32.gmra.mxu0 %v376
  %v416 = vpop.f32.mrf.mxu0
  %v417 = vadd.f32 %v352, %v416
  %418 = vmatmul.f32.gmra.mxu0 %v379
  %v419 = vpop.f32.mrf.mxu0
  %v420 = vadd.f32 %v355, %v419
  %421 = vmatmul.f32.gmra.mxu0 %v382
  %v422 = vpop.f32.mrf.mxu0
  %v423 = vadd.f32 %v358, %v422
  %424 = vmatmul.f32.gmra.mxu0 %v385
  %v425 = vpop.f32.mrf.mxu0
  %v426 = vadd.f32 %v361, %v425
  %427 = vmatmul.f32.gmra.mxu0 %v388
  %v428 = vpop.f32.mrf.mxu0
  %v429 = vadd.f32 %v364, %v428
  %430 = vmatmul.f32.gmra.mxu0 %v391
  %v431 = vpop.f32.mrf.mxu0
  %v432 = vadd.f32 %v367, %v431
  %433 = vmatmul.f32.gmra.mxu0 %v394
  %v434 = vpop.f32.mrf.mxu0
  %v435 = vadd.f32 %v370, %v434
  %436 = vdwg.mxu0
  %v437 = vperm.slane %v50, 1
  %v438 = vadd.f32 %v414, %v437
  %v439 = vadd.f32 %v417, %v437
  %v440 = vadd.f32 %v420, %v437
  %v441 = vadd.f32 %v423, %v437
  %v442 = vadd.f32 %v426, %v437
  %v443 = vadd.f32 %v429, %v437
  %v444 = vadd.f32 %v432, %v437
  %v445 = vadd.f32 %v435, %v437
  %v446 = vmax.f32 %v438, 0.0
  %v447 = vmax.f32 %v439, 0.0
  %v448 = vmax.f32 %v440, 0.0
  %v449 = vmax.f32 %v441, 0.0
  %v450 = vmax.f32 %v442, 0.0
  %v451 = vmax.f32 %v443, 0.0
  %v452 = vmax.f32 %v444, 0.0
  %v453 = vmax.f32 %v445, 0.0
  %454 = vmatpush.msra.mxu0 0.0
  %455 = vmatpush.msra.mxu0 0.0
  %456 = vmatpush.msra.mxu0 0.0
  %457 = vmatpush.msra.mxu0 0.0
  %458 = vmatpush.msra.mxu0 0.0
  %459 = vmatpush.msra.mxu0 0.0
  %460 = vmatpush.msra.mxu0 0.0
  %461 = vmatpush.msra.mxu0 0.0
  %462 = vmatpush.msra.mxu0 %v453
  %463 = vmatpush.msra.mxu0 %v452
  %464 = vmatpush.msra.mxu0 %v451
  %465 = vmatpush.msra.mxu0 %v450
  %466 = vmatpush.msra.mxu0 %v449
  %467 = vmatpush.msra.mxu0 %v448
  %468 = vmatpush.msra.mxu0 %v447
  %469 = vmatpush.msra.mxu0 %v446
  %470 = vmatmul.f32.gmra.mxu0 %v53
  %v471 = vpop.f32.mrf.mxu0
  %v472 = vadd.f32 0.0, %v471
  %473 = vmatmul.f32.gmra.mxu0 %v56
  %v474 = vpop.f32.mrf.mxu0
  %v475 = vadd.f32 0.0, %v474
  %476 = vmatmul.f32.gmra.mxu0 %v59
  %v477 = vpop.f32.mrf.mxu0
  %v478 = vadd.f32 0.0, %v477
  %479 = vmatmul.f32.gmra.mxu0 %v62
  %v480 = vpop.f32.mrf.mxu0
  %v481 = vadd.f32 0.0, %v480
  %482 = vmatmul.f32.gmra.mxu0 %v65
  %v483 = vpop.f32.mrf.mxu0
  %v484 = vadd.f32 0.0, %v483
  %485 = vmatmul.f32.gmra.mxu0 %v68
  %v486 = vpop.f32.mrf.mxu0
  %v487 = vadd.f32 0.0, %v486
  %488 = vmatmul.f32.gmra.mxu0 %v71
  %v489 = vpop.f32.mrf.mxu0
  %v490 = vadd.f32 0.0, %v489
  %491 = vmatmul.f32.gmra.mxu0 %v74
  %v492 = vpop.f32.mrf.mxu0
  %v493 = vadd.f32 0.0, %v492
  %494 = vdwg.mxu0
  %v496 = vsel %vm306, %v472, 0
  %v499 = vsel %vm306, %v475, 0
  %v502 = vsel %vm306, %v478, 0
  %v505 = vsel %vm306, %v481, 0
  %v508 = vsel %vm306, %v484, 0
  %v511 = vsel %vm306, %v487, 0
  %v514 = vsel %vm306, %v490, 0
  %v517 = vsel %vm306, %v493, 0
  %519 = vmatpush.msra.mxu0 0.0
  %520 = vmatpush.msra.mxu0 0.0
  %521 = vmatpush.msra.mxu0 0.0
  %522 = vmatpush.msra.mxu0 0.0
  %523 = vmatpush.msra.mxu0 0.0
  %524 = vmatpush.msra.mxu0 0.0
  %525 = vmatpush.msra.mxu0 0.0
  %526 = vmatpush.msra.mxu0 0.0
  %527 = vmatpush.msra.mxu0 0.0
  %528 = vmatpush.msra.mxu0 0.0
  %529 = vmatpush.msra.mxu0 0.0
  %530 = vmatpush.msra.mxu0 0.0
  %531 = vmatpush.msra.mxu0 %v49
  %532 = vmatpush.msra.mxu0 %v48
  %533 = vmatpush.msra.mxu0 %v47
  %534 = vmatpush.msra.mxu0 %v46
  %535 = vmatmul.f32.gmra.mxu0 %v496
  %v536 = vpop.f32.mrf.mxu0
  %v537 = vadd.f32 0.0, %v536
  %538 = vmatmul.f32.gmra.mxu0 %v499
  %v539 = vpop.f32.mrf.mxu0
  %v540 = vadd.f32 0.0, %v539
  %541 = vmatmul.f32.gmra.mxu0 %v502
  %v542 = vpop.f32.mrf.mxu0
  %v543 = vadd.f32 0.0, %v542
  %544 = vmatmul.f32.gmra.mxu0 %v505
  %v545 = vpop.f32.mrf.mxu0
  %v546 = vadd.f32 0.0, %v545
  %547 = vmatmul.f32.gmra.mxu0 %v508
  %v548 = vpop.f32.mrf.mxu0
  %v549 = vadd.f32 0.0, %v548
  %550 = vmatmul.f32.gmra.mxu0 %v511
  %v551 = vpop.f32.mrf.mxu0
  %v552 = vadd.f32 0.0, %v551
  %553 = vmatmul.f32.gmra.mxu0 %v514
  %v554 = vpop.f32.mrf.mxu0
  %v555 = vadd.f32 0.0, %v554
  %556 = vmatmul.f32.gmra.mxu0 %v517
  %v557 = vpop.f32.mrf.mxu0
  %v558 = vadd.f32 0.0, %v557
  %559 = vdwg.mxu0
  %v561 = vsel %vm306, %v446, 0
  %v564 = vsel %vm306, %v447, 0
  %v567 = vsel %vm306, %v448, 0
  %v570 = vsel %vm306, %v449, 0
  %v573 = vsel %vm306, %v450, 0
  %v576 = vsel %vm306, %v451, 0
  %v579 = vsel %vm306, %v452, 0
  %v582 = vsel %vm306, %v453, 0
  %584 = vmatpush.msra.mxu0 0.0
  %585 = vmatpush.msra.mxu0 0.0
  %586 = vmatpush.msra.mxu0 0.0
  %587 = vmatpush.msra.mxu0 0.0
  %588 = vmatpush.msra.mxu0 0.0
  %589 = vmatpush.msra.mxu0 0.0
  %590 = vmatpush.msra.mxu0 0.0
  %591 = vmatpush.msra.mxu0 0.0
  %592 = vmatpush.msra.mxu0 0.0
  %593 = vmatpush.msra.mxu0 0.0
  %594 = vmatpush.msra.mxu0 0.0
  %595 = vmatpush.msra.mxu0 0.0
  %596 = vmatpush.msra.mxu0 %v45
  %597 = vmatpush.msra.mxu0 %v44
  %598 = vmatpush.msra.mxu0 %v43
  %599 = vmatpush.msra.mxu0 %v42
  %600 = vmatmul.f32.gmra.mxu0 %v561
  %v601 = vpop.f32.mrf.mxu0
  %v602 = vadd.f32 %v537, %v601
  %603 = vmatmul.f32.gmra.mxu0 %v564
  %v604 = vpop.f32.mrf.mxu0
  %v605 = vadd.f32 %v540, %v604
  %606 = vmatmul.f32.gmra.mxu0 %v567
  %v607 = vpop.f32.mrf.mxu0
  %v608 = vadd.f32 %v543, %v607
  %609 = vmatmul.f32.gmra.mxu0 %v570
  %v610 = vpop.f32.mrf.mxu0
  %v611 = vadd.f32 %v546, %v610
  %612 = vmatmul.f32.gmra.mxu0 %v573
  %v613 = vpop.f32.mrf.mxu0
  %v614 = vadd.f32 %v549, %v613
  %615 = vmatmul.f32.gmra.mxu0 %v576
  %v616 = vpop.f32.mrf.mxu0
  %v617 = vadd.f32 %v552, %v616
  %618 = vmatmul.f32.gmra.mxu0 %v579
  %v619 = vpop.f32.mrf.mxu0
  %v620 = vadd.f32 %v555, %v619
  %621 = vmatmul.f32.gmra.mxu0 %v582
  %v622 = vpop.f32.mrf.mxu0
  %v623 = vadd.f32 %v558, %v622
  %624 = vdwg.mxu0
  %v625 = vperm.slane %v50, 2
  %v626 = vadd.f32 %v602, %v625
  %v627 = vadd.f32 %v605, %v625
  %v628 = vadd.f32 %v608, %v625
  %v629 = vadd.f32 %v611, %v625
  %v630 = vadd.f32 %v614, %v625
  %v631 = vadd.f32 %v617, %v625
  %v632 = vadd.f32 %v620, %v625
  %v633 = vadd.f32 %v623, %v625
  %vm634 = vcmask 64512
  %635 = vst.msk [vmem:[%s3] sm:$0xff] %vm634, %v626
  %636 = vst.msk [vmem:[%s3 + $0x8] sm:$0xff] %vm634, %v627
  %637 = vst.msk [vmem:[%s3 + $0x10] sm:$0xff] %vm634, %v628
  %638 = vst.msk [vmem:[%s3 + $0x18] sm:$0xff] %vm634, %v629
  %639 = vst.msk [vmem:[%s3 + $0x20] sm:$0xff] %vm634, %v630
  %640 = vst.msk [vmem:[%s3 + $0x28] sm:$0xff] %vm634, %v631
  %641 = vst.msk [vmem:[%s3 + $0x30] sm:$0xff] %vm634, %v632
  %642 = vst.msk [vmem:[%s3 + $0x38] sm:$0xff] %vm634, %v633
  // Predicated region
  $region14: #{gnn_forward.1} parent=0 // pred_check
    _
  $region15: #{gnn_forward.1} parent=0 // pred_check_branch
    %644 = sbr.rel (0) target = $region17
  $region16: #{gnn_forward.1} parent=0 // pred_region
    _
  $region17: #{gnn_forward.1} parent=0 // pred_fallthru
    _
  // Predicated region
  $region18: #{gnn_forward.1} parent=0 // pred_check
    _
  $region19: #{gnn_forward.1} parent=0 // pred_check_branch
    %646 = sbr.rel (0) target = $region21
  $region20: #{gnn_forward.1} parent=0 // pred_region
    _
  $region21: #{gnn_forward.1} parent=0 // pred_fallthru
    _

</llo_original>
